<compile_context>
chip_gen: v5e
topology: v5e:2x2
jax: 0.10.0
libtpu: 0.0.40
codegen_flags: <defaults>
</compile_context>

<pallas_src>
from functools import partial

import jax
import jax.numpy as jnp
from jax.experimental import pallas as pl
from jax.experimental.pallas import tpu as pltpu


def _prenorm_kernel(eps, x_ref, g_ref, w_ref, b_ref, o_ref):
    # x_ref: (C, TM)  g_ref: (C, 1)  w_ref: (C_out, C_in)  b_ref: (C_out, 1)
    x = x_ref[...].astype(jnp.float32)

    # Channel LayerNorm (reduction over sublane axis 0 == PyTorch dim=1).
    mean = jnp.mean(x, axis=0, keepdims=True)            # (1, TM)
    xc = x - mean
    var = jnp.mean(xc * xc, axis=0, keepdims=True)       # unbiased=False
    inv = jax.lax.rsqrt(var + eps)                       # EUP slot
    xn = xc * inv * g_ref[...].astype(jnp.float32)       # (C, TM)

    # fn == 1x1 conv: channel matmul + bias.  Feed the MXU in the parameter
    # dtype (bf16 weights stay bf16 on v6e/v7x); accumulate in f32.
    y = jnp.dot(w_ref[...], xn.astype(w_ref.dtype),
                preferred_element_type=jnp.float32)
    y = y + b_ref[...].astype(jnp.float32)
    o_ref[...] = y.astype(o_ref.dtype)


def _choose_tm(hw, c, itemsize, per_block_vmem_bytes):
    """Largest spatial tile (multiple of 128) whose (C, TM) block fits the
    per-block VMEM budget; never larger than the 128-padded spatial extent."""
    tm = per_block_vmem_bytes // max(1, c * itemsize)
    tm = max(128, (tm // 128) * 128)
    tm = min(tm, 2048)                       # keep several grid steps alive
    hw_pad128 = ((hw + 127) // 128) * 128
    return min(tm, hw_pad128)


def prenorm_conv1x1(x_nchw, g, w_conv, b_conv, *, tm=None,
                    per_block_vmem_bytes=6 << 20):
    """PreNorm(dim, Conv2d(dim, dim, 1)) forward.

    x_nchw : (N, C, H, W)
    g      : (1, C, 1, 1)   LayerNorm gain
    w_conv : (C_out, C_in, 1, 1)
    b_conv : (C_out,)
    """
    N, C, H, W = x_nchw.shape
    eps = 1e-5 if x_nchw.dtype == jnp.float32 else 1e-3
    HW = H * W
    itemsize = jnp.dtype(x_nchw.dtype).itemsize

    if tm is None:
        tm = _choose_tm(HW, C, itemsize, per_block_vmem_bytes)

    HWp = pl.cdiv(HW, tm) * tm

    # Free reshape -- no NCHW<->NHWC transpose round trip.
    x3 = x_nchw.reshape(N, C, HW)
    if HWp != HW:
        x3 = jnp.pad(x3, ((0, 0), (0, 0), (0, HWp - HW)))

    g2 = g.reshape(C, 1)
    w2 = w_conv.reshape(w_conv.shape[0], w_conv.shape[1])   # (C_out, C_in)
    b2 = b_conv.reshape(-1, 1)                              # (C_out, 1)

    # Explicit VMEM budget: double-buffered (C, TM) x/out blocks plus
    # gain/weight/bias blocks, with headroom; clamped to fit every TPU gen.
    blk_bytes = tm * C * itemsize
    param_bytes = (C * C + 2 * C) * jnp.dtype(w2.dtype).itemsize
    vmem_limit = int(min(max(4 * blk_bytes + 2 * param_bytes + (8 << 20),
                             32 << 20), 48 << 20))

    grid = (N, HWp // tm)

    out3 = pl.pallas_call(
        partial(_prenorm_kernel, eps),
        out_shape=jax.ShapeDtypeStruct((N, C, HWp), x_nchw.dtype),
        grid_spec=pltpu.PrefetchScalarGridSpec(
            num_scalar_prefetch=0,
            grid=grid,
            in_specs=[
                pl.BlockSpec((None, C, tm), lambda n, j: (n, 0, j)),
                # Invariant operands: constant index_map -> fetched once.
                pl.BlockSpec((C, 1), lambda n, j: (0, 0)),
                pl.BlockSpec((C, C), lambda n, j: (0, 0)),
                pl.BlockSpec((C, 1), lambda n, j: (0, 0)),
            ],
            out_specs=pl.BlockSpec((None, C, tm), lambda n, j: (n, 0, j)),
        ),
        compiler_params=pltpu.CompilerParams(
            dimension_semantics=("parallel", "parallel"),
            vmem_limit_bytes=vmem_limit),
    )(x3, g2, w2, b2)

    if HWp != HW:
        out3 = out3[:, :, :HW]
    return out3.reshape(N, C, H, W)


def _reference(x, g, w_conv, b_conv):
    eps = 1e-5 if x.dtype == jnp.float32 else 1e-3
    mean = jnp.mean(x, axis=1, keepdims=True)
    var = jnp.mean((x - mean) ** 2, axis=1, keepdims=True)
    xn = (x - mean) * jax.lax.rsqrt(var + eps) * g
    w = w_conv.reshape(w_conv.shape[0], w_conv.shape[1])
    return jnp.einsum("oc,nchw->nohw", w, xn) + b_conv.reshape(1, -1, 1, 1)


if __name__ == "__main__":
    key = jax.random.PRNGKey(0)
    N, C, H, W = 2, 32, 16, 16

    kx, kw, kb = jax.random.split(key, 3)
    x = jax.random.normal(kx, (N, C, H, W), dtype=jnp.float32)

    # Parameters (deterministic, synthetic):
    g = jnp.ones((1, C, 1, 1), dtype=jnp.float32)               # LayerNorm.g init
    w_conv = 0.1 * jax.random.normal(kw, (C, C, 1, 1), dtype=jnp.float32)
    b_conv = 0.1 * jax.random.normal(kb, (C,), dtype=jnp.float32)

    out = prenorm_conv1x1(x, g, w_conv, b_conv)
    out = jax.block_until_ready(out)

    ref = _reference(x, g, w_conv, b_conv)
    assert out.shape == (N, C, H, W)
    assert jnp.max(jnp.abs(out - ref)) < 1e-4, "mismatch vs reference"

    print("KERNEL_OK")
</pallas_src>

<mosaic_0001>
module attributes {stable_mosaic.version = 11 : i64} {
  func.func @_prenorm_kernel(%arg0: i32, %arg1: i32, %arg2: memref<1x32x256xf32, #tpu.memory_space<vmem>>, %arg3: memref<32x1xf32, #tpu.memory_space<vmem>>, %arg4: memref<32x32xf32, #tpu.memory_space<vmem>>, %arg5: memref<32x1xf32, #tpu.memory_space<vmem>>, %arg6: memref<1x32x256xf32, #tpu.memory_space<vmem>>) attributes {dimension_semantics = [#tpu.dimension_semantics<parallel>, #tpu.dimension_semantics<parallel>], iteration_bounds = array<i64: 2, 1>, scalar_prefetch = 0 : i64, scratch_operands = 0 : i64, tpu.core_type = #tpu.core_type<tc>, window_params = [{transform_indices = @transform_0, window_bounds = array<i64: 1, 32, 256>}, {pipeline_mode = #tpu.pipeline_mode<synchronous>, transform_indices = @transform_1, window_bounds = array<i64: 32, 1>}, {pipeline_mode = #tpu.pipeline_mode<synchronous>, transform_indices = @transform_2, window_bounds = array<i64: 32, 32>}, {pipeline_mode = #tpu.pipeline_mode<synchronous>, transform_indices = @transform_3, window_bounds = array<i64: 32, 1>}, {transform_indices = @transform_4, window_bounds = array<i64: 1, 32, 256>}]} {
    %c0 = arith.constant 0 : index
    %c0_0 = arith.constant 0 : index
    %c0_1 = arith.constant 0 : index
    %0 = vector.load %arg2[%c0, %c0_0, %c0_1] : memref<1x32x256xf32, #tpu.memory_space<vmem>>, vector<1x32x256xf32>
    %1 = vector.shape_cast %0 : vector<1x32x256xf32> to vector<32x256xf32>
    %cst = arith.constant dense<0.000000e+00> : vector<256xf32>
    %2 = vector.multi_reduction <add>, %1, %cst [0] : vector<32x256xf32> to vector<256xf32>
    %3 = vector.shape_cast %2 : vector<256xf32> to vector<1x256xf32>
    %cst_2 = arith.constant 3.200000e+01 : f32
    %4 = vector.broadcast %cst_2 : f32 to vector<1x256xf32>
    %5 = arith.divf %3, %4 : vector<1x256xf32>
    %6 = vector.broadcast %5 : vector<1x256xf32> to vector<32x256xf32>
    %7 = arith.subf %1, %6 : vector<32x256xf32>
    %8 = arith.mulf %7, %7 : vector<32x256xf32>
    %cst_3 = arith.constant dense<0.000000e+00> : vector<256xf32>
    %9 = vector.multi_reduction <add>, %8, %cst_3 [0] : vector<32x256xf32> to vector<256xf32>
    %10 = vector.shape_cast %9 : vector<256xf32> to vector<1x256xf32>
    %cst_4 = arith.constant 3.200000e+01 : f32
    %11 = vector.broadcast %cst_4 : f32 to vector<1x256xf32>
    %12 = arith.divf %10, %11 : vector<1x256xf32>
    %cst_5 = arith.constant 9.99999974E-6 : f32
    %13 = vector.broadcast %cst_5 : f32 to vector<1x256xf32>
    %14 = arith.addf %12, %13 : vector<1x256xf32>
    %15 = math.rsqrt %14 : vector<1x256xf32>
    %16 = vector.broadcast %15 : vector<1x256xf32> to vector<32x256xf32>
    %17 = arith.mulf %7, %16 : vector<32x256xf32>
    %c0_6 = arith.constant 0 : index
    %c0_7 = arith.constant 0 : index
    %18 = vector.load %arg3[%c0_6, %c0_7] : memref<32x1xf32, #tpu.memory_space<vmem>>, vector<32x1xf32>
    %19 = vector.broadcast %18 : vector<32x1xf32> to vector<32x256xf32>
    %20 = arith.mulf %17, %19 : vector<32x256xf32>
    %c0_8 = arith.constant 0 : index
    %c0_9 = arith.constant 0 : index
    %21 = vector.load %arg4[%c0_8, %c0_9] : memref<32x32xf32, #tpu.memory_space<vmem>>, vector<32x32xf32>
    %cst_10 = arith.constant dense<0.000000e+00> : vector<32x256xf32>
    %22 = tpu.matmul %21, %20, %cst_10 {dimension_numbers = #tpu.dot_dimension_numbers<[1], [0], [0], [1], [0, 0, 1, 1], [], []>} : vector<32x32xf32>, vector<32x256xf32>, vector<32x256xf32> -> vector<32x256xf32>
    %c0_11 = arith.constant 0 : index
    %c0_12 = arith.constant 0 : index
    %23 = vector.load %arg5[%c0_11, %c0_12] : memref<32x1xf32, #tpu.memory_space<vmem>>, vector<32x1xf32>
    %24 = vector.broadcast %23 : vector<32x1xf32> to vector<32x256xf32>
    %25 = arith.addf %22, %24 : vector<32x256xf32>
    %c0_13 = arith.constant 0 : index
    %c0_14 = arith.constant 0 : index
    %c0_15 = arith.constant 0 : index
    %26 = vector.load %arg6[%c0_13, %c0_14, %c0_15] : memref<1x32x256xf32, #tpu.memory_space<vmem>>, vector<1x32x256xf32>
    %27 = vector.shape_cast %26 : vector<1x32x256xf32> to vector<32x256xf32>
    %28 = vector.shape_cast %25 : vector<32x256xf32> to vector<1x32x256xf32>
    tpu.vector_store %arg6[%c0_13, %c0_14, %c0_15], %28 {strides = array<i32>} : memref<1x32x256xf32, #tpu.memory_space<vmem>>, vector<1x32x256xf32>,
    return
  }
  func.func @transform_0(%arg0: i32, %arg1: i32) -> (i32, i32, i32) {
    %c0_i32 = arith.constant 0 : i32
    %c0_i32_0 = arith.constant 0 : i32
    return %arg0, %c0_i32, %arg1 : i32, i32, i32
  }
  func.func @transform_1(%arg0: i32, %arg1: i32) -> (i32, i32) {
    %c0_i32 = arith.constant 0 : i32
    %c0_i32_0 = arith.constant 0 : i32
    %c0_i32_1 = arith.constant 0 : i32
    return %c0_i32, %c0_i32_0 : i32, i32
  }
  func.func @transform_2(%arg0: i32, %arg1: i32) -> (i32, i32) {
    %c0_i32 = arith.constant 0 : i32
    %c0_i32_0 = arith.constant 0 : i32
    %c0_i32_1 = arith.constant 0 : i32
    return %c0_i32, %c0_i32_0 : i32, i32
  }
  func.func @transform_3(%arg0: i32, %arg1: i32) -> (i32, i32) {
    %c0_i32 = arith.constant 0 : i32
    %c0_i32_0 = arith.constant 0 : i32
    %c0_i32_1 = arith.constant 0 : i32
    return %c0_i32, %c0_i32_0 : i32, i32
  }
  func.func @transform_4(%arg0: i32, %arg1: i32) -> (i32, i32, i32) {
    %c0_i32 = arith.constant 0 : i32
    %c0_i32_0 = arith.constant 0 : i32
    return %arg0, %c0_i32, %arg1 : i32, i32, i32
  }
}

</mosaic_0001>

<llo_original>
// kernel: tpu_custom_call.1
$region0: #{tpu_custom_call.1}
  #allocation0 [shape = 'u32[]', space=smem, size = 0x4, offset = 0x4, fixed_abs, tag = 'smem constant byte address 0x4 - core index']
  #allocation1 [shape = 'u32[72,128]{1,0:T(1,128)}', space=vmem, size = 0x9000, scoped, tag = 'internal scratch']
  %s0 = inlined_call_operand.hbm [shape: f32[2,32,256], index: 0, kind: input, shape index: {}]
  %s1 = inlined_call_operand.vmem [shape: f32[32,1], index: 1, kind: input, shape index: {}]
  %s2 = inlined_call_operand.vmem [shape: f32[32,32], index: 2, kind: input, shape index: {}]
  %s3 = inlined_call_operand.vmem [shape: f32[32,1], index: 3, kind: input, shape index: {}]
  %s4 = inlined_call_operand.hbm [shape: f32[2,32,256], index: 4, kind: output, shape index: {}]
  %s5 = sld [smem:[#allocation0]]
  $region53: #{tpu_custom_call.1} parent=0
    _
  %s7 = ssub.s32 1, %s5
  %s8 = scalar_select 0, %s7, %s5
  $region1: #{tpu_custom_call.1} parent=0
    #allocation2 [shape = 'u8[65536]{0}', space=vmem, size = 0x10000, scoped, tag = 'input window, operand 0']
    #allocation3 [shape = 's32[2]{0}', space=sflag, size = 0x8, scoped, tag = 'scoped memory for tpu_custom_call.1']
    #allocation4 [shape = 's32[2]{0}', space=sflag, size = 0x8, scoped, tag = 'scoped memory for tpu_custom_call.1']
    #allocation5 [shape = 'u8[65536]{0}', space=vmem, size = 0x10000, scoped, tag = 'output window, operand 0']
    %9 = vsyncpa [#allocation3], 0
    %s10 = scalar_lea.sflag [#allocation3], 1
    %11 = vsyncpa %s10, 0
    %12 = vsyncpa [#allocation4], 0
    %s13 = scalar_lea.sflag [#allocation4], 1
    %14 = vsyncpa %s13, 0
    loop: start=0, step=1, limit=4
    $region2: #{tpu_custom_call.1} parent=1 // loop_pre_header
      _
    $region3: #{tpu_custom_call.1} parent=1 // loop_header
      %s16 = sphi 0, %s20
      %p17 = scmp.ge.s32.totalorder %s16, 4
      %s23 = sphi 0, %s35
      %s24 = sphi 0, %s31
      %s25 = sphi 0, %s23
      %s26 = sphi 0, %s24
      %s27 = sphi 0, %s25
      %s28 = sphi 0, %s26
      %s40 = sphi 0, %s42
      %s43 = sphi 0, %s40
      %s44 = sphi 0, %s43
      %s60 = sphi 0, %s44
      %s64 = sphi 0, %s64
      %s66 = sphi 0, %s64
      %s67 = sphi 0, %s66
      %s81 = sphi 0, %s67
      %s85 = sphi 0, %s85
      %s87 = sphi 0, %s85
      %s88 = sphi 0, %s87
      %s102 = sphi 0, %s88
      %s106 = sphi 0, %s106
      %s108 = sphi 0, %s106
      %s109 = sphi 0, %s108
      %s123 = sphi 0, %s109
      %s131 = sphi 0, %s133
      %s134 = sphi 0, %s131
      %s135 = sphi 0, %s134
      %s151 = sphi 0, %s135
    $region4: #{tpu_custom_call.1} parent=1 // loop_header_branch
      %19 = sbr.rel (%p17) target = $region8
    $region5: #{tpu_custom_call.1} parent=1 // loop_body
      %s21 = ssub.s32 %s16, 1
      %s22 = ssub.s32 %s16, 2
      %s29 = sadd.s32 1, %s24
      %p30 = scmp.ge.s32.totalorder %s29, 1
      %s31 = scalar_select %p30, 0, %s29
      %s32 = sadd.s32 1, %s23
      %s33 = scalar_select %p30, %s32, %s23
      %p34 = scmp.ge.s32.totalorder %s33, 2
      %s35 = scalar_select %p34, 0, %s33
      %s36 = ssub.s32 %s23, %s35
      %s37 = ssub.s32 %s24, %s31
      %s38 = sor.u32 %s36, %s37
      %p39 = scmp.eq.s32.totalorder %s38, 0
      %s41 = sadd.s32 %s40, 1
      %s42 = scalar_select %p39, %s40, %s41
      %p45 = pneg %p39
      %p46 = scmp.eq.s32.totalorder %s16, 1
      %p47 = por %p45, %p46
      %p48 = scmp.ne.s32.totalorder %s40, %s43
      %p49 = scmp.eq.s32.totalorder %s16, 0
      %p50 = por %p48, %p49
      %p51 = scmp.ne.s32.totalorder %s40, %s43
      %p52 = scmp.eq.s32.totalorder %s21, 1
      %p53 = por %p51, %p52
      %p54 = scmp.ne.s32.totalorder %s43, %s44
      %p55 = scmp.eq.s32.totalorder %s21, 0
      %p56 = por %p54, %p55
      %p57 = scmp.ne.s32.totalorder %s43, %s44
      %p58 = scmp.eq.s32.totalorder %s22, 1
      %p59 = por %p57, %p58
      %p61 = scmp.ne.s32.totalorder %s44, %s60
      %p62 = scmp.eq.s32.totalorder %s22, 0
      %p63 = por %p61, %p62
      %s65 = sadd.s32 %s64, 1
      %p68 = scmp.eq.s32.totalorder %s16, 1
      %p69 = scmp.ne.s32.totalorder %s64, %s66
      %p70 = scmp.eq.s32.totalorder %s16, 0
      %p71 = por %p69, %p70
      %p72 = scmp.ne.s32.totalorder %s64, %s66
      %p73 = scmp.eq.s32.totalorder %s21, 1
      %p74 = por %p72, %p73
      %p75 = scmp.ne.s32.totalorder %s66, %s67
      %p76 = scmp.eq.s32.totalorder %s21, 0
      %p77 = por %p75, %p76
      %p78 = scmp.ne.s32.totalorder %s66, %s67
      %p79 = scmp.eq.s32.totalorder %s22, 1
      %p80 = por %p78, %p79
      %p82 = scmp.ne.s32.totalorder %s67, %s81
      %p83 = scmp.eq.s32.totalorder %s22, 0
      %p84 = por %p82, %p83
      %s86 = sadd.s32 %s85, 1
      %p89 = scmp.eq.s32.totalorder %s16, 1
      %p90 = scmp.ne.s32.totalorder %s85, %s87
      %p91 = scmp.eq.s32.totalorder %s16, 0
      %p92 = por %p90, %p91
      %p93 = scmp.ne.s32.totalorder %s85, %s87
      %p94 = scmp.eq.s32.totalorder %s21, 1
      %p95 = por %p93, %p94
      %p96 = scmp.ne.s32.totalorder %s87, %s88
      %p97 = scmp.eq.s32.totalorder %s21, 0
      %p98 = por %p96, %p97
      %p99 = scmp.ne.s32.totalorder %s87, %s88
      %p100 = scmp.eq.s32.totalorder %s22, 1
      %p101 = por %p99, %p100
      %p103 = scmp.ne.s32.totalorder %s88, %s102
      %p104 = scmp.eq.s32.totalorder %s22, 0
      %p105 = por %p103, %p104
      %s107 = sadd.s32 %s106, 1
      %p110 = scmp.eq.s32.totalorder %s16, 1
      %p111 = scmp.ne.s32.totalorder %s106, %s108
      %p112 = scmp.eq.s32.totalorder %s16, 0
      %p113 = por %p111, %p112
      %p114 = scmp.ne.s32.totalorder %s106, %s108
      %p115 = scmp.eq.s32.totalorder %s21, 1
      %p116 = por %p114, %p115
      %p117 = scmp.ne.s32.totalorder %s108, %s109
      %p118 = scmp.eq.s32.totalorder %s21, 0
      %p119 = por %p117, %p118
      %p120 = scmp.ne.s32.totalorder %s108, %s109
      %p121 = scmp.eq.s32.totalorder %s22, 1
      %p122 = por %p120, %p121
      %p124 = scmp.ne.s32.totalorder %s109, %s123
      %p125 = scmp.eq.s32.totalorder %s22, 0
      %p126 = por %p124, %p125
      %s127 = ssub.s32 %s23, %s35
      %s128 = ssub.s32 %s24, %s31
      %s129 = sor.u32 %s127, %s128
      %p130 = scmp.eq.s32.totalorder %s129, 0
      %s132 = sadd.s32 %s131, 1
      %s133 = scalar_select %p130, %s131, %s132
      %p136 = pneg %p130
      %p137 = scmp.eq.s32.totalorder %s16, 1
      %p138 = por %p136, %p137
      %p139 = scmp.ne.s32.totalorder %s131, %s134
      %p140 = scmp.eq.s32.totalorder %s16, 0
      %p141 = por %p139, %p140
      %p142 = scmp.ne.s32.totalorder %s131, %s134
      %p143 = scmp.eq.s32.totalorder %s21, 1
      %p144 = por %p142, %p143
      %p145 = scmp.ne.s32.totalorder %s134, %s135
      %p146 = scmp.eq.s32.totalorder %s21, 0
      %p147 = por %p145, %p146
      %p148 = scmp.ne.s32.totalorder %s134, %s135
      %p149 = scmp.eq.s32.totalorder %s22, 1
      %p150 = por %p148, %p149
      %p152 = scmp.ne.s32.totalorder %s135, %s151
      %p153 = scmp.eq.s32.totalorder %s22, 0
      %p154 = por %p152, %p153
      %p155 = scmp.le.s32.totalorder 1, %s16
      %p156 = scmp.lt.s32.totalorder %s16, 3
      %p157 = pnand %p155, %p156
      %p158 = pneg %p157
      // Predicated region
      $region9: #{tpu_custom_call.1} parent=5 // pred_check
        _
      $region10: #{tpu_custom_call.1} parent=5 // pred_check_branch
        %160 = sbr.rel (%p157) target = $region12
      $region11: #{tpu_custom_call.1} parent=5 // pred_region
        %s161 = ssub.s32 %s16, 1
        // Predicated region
        $region13: #{tpu_custom_call.1} parent=11 // pred_check
          %p162 = pneg %p77
        $region14: #{tpu_custom_call.1} parent=11 // pred_check_branch
          %164 = sbr.rel (%p162) target = $region16
        $region15: #{tpu_custom_call.1} parent=11 // pred_region
          _
        $region16: #{tpu_custom_call.1} parent=11 // pred_fallthru
          _
        // Predicated region
        $region17: #{tpu_custom_call.1} parent=11 // pred_check
          %p165 = pneg %p98
        $region18: #{tpu_custom_call.1} parent=11 // pred_check_branch
          %167 = sbr.rel (%p165) target = $region20
        $region19: #{tpu_custom_call.1} parent=11 // pred_region
          _
        $region20: #{tpu_custom_call.1} parent=11 // pred_fallthru
          _
        // Predicated region
        $region21: #{tpu_custom_call.1} parent=11 // pred_check
          %p168 = pneg %p119
        $region22: #{tpu_custom_call.1} parent=11 // pred_check_branch
          %170 = sbr.rel (%p168) target = $region24
        $region23: #{tpu_custom_call.1} parent=11 // pred_region
          _
        $region24: #{tpu_custom_call.1} parent=11 // pred_fallthru
          _
      $region12: #{tpu_custom_call.1} parent=5 // pred_fallthru
        _
      %p171 = scmp.lt.s32.totalorder %s16, 2
      // Predicated region
      $region25: #{tpu_custom_call.1} parent=5 // pred_check
        %p172 = pneg %p171
      $region26: #{tpu_custom_call.1} parent=5 // pred_check_branch
        %174 = sbr.rel (%p172) target = $region28
      $region27: #{tpu_custom_call.1} parent=5 // pred_region
        // Predicated region
        $region29: #{tpu_custom_call.1} parent=27 // pred_check
          %p175 = pneg %p50
        $region30: #{tpu_custom_call.1} parent=27 // pred_check_branch
          %177 = sbr.rel (%p175) target = $region32
        $region31: #{tpu_custom_call.1} parent=27 // pred_region
          %s178 = sand.u32 %s40, 1
          %s179 = scalar_lea.sflag [#allocation3], %s178
          %s180 = sand.u32 %s40, 1
          %s181 = smul.addr %s180, 64
          %s182 = scalar_lea.vmem [#allocation2], %s181
          %s183 = smul.u32 2, %s24
          %185 = vsyncadd %s179, 0
          %s186 = smul.addr %s23, 8
          %s187 = sadd.s32 %s183, %s186
          %s188 = smul.addr %s187, 8
          %s189 = scalar_lea.hbm %s0, %s188
          %s190 = sshll.u32 %s189, 4
          %s191 = int_to_ptr.hbm [resolvable:$true] %s190
          %s192 = sshll.u32 %s182, 4
          %s193 = int_to_ptr.vmem [resolvable:$true] %s192
          %198 = dma.hbm_to_vmem [thread:$0]  %s191, 1024, %s193, %s179, 256, 256, 16
        $region32: #{tpu_custom_call.1} parent=27 // pred_fallthru
          _
      $region28: #{tpu_custom_call.1} parent=5 // pred_fallthru
        _
      %p199 = scmp.le.s32.totalorder 1, %s16
      %p200 = scmp.lt.s32.totalorder %s16, 3
      %p201 = pnand %p199, %p200
      %p202 = pneg %p201
      // Predicated region
      $region33: #{tpu_custom_call.1} parent=5 // pred_check
        _
      $region34: #{tpu_custom_call.1} parent=5 // pred_check_branch
        %204 = sbr.rel (%p201) target = $region36
      $region35: #{tpu_custom_call.1} parent=5 // pred_region
        %s205 = ssub.s32 %s16, 1
        %s206 = sand.u32 %s43, 1
        %s207 = scalar_lea.sflag [#allocation3], %s206
        %s208 = sand.u32 %s43, 1
        %s209 = smul.addr %s208, 64
        %s210 = scalar_lea.vmem [#allocation2], %s209
        // Predicated region
        $region37: #{tpu_custom_call.1} parent=35 // pred_check
          %p211 = pneg %p56
        $region38: #{tpu_custom_call.1} parent=35 // pred_check_branch
          %213 = sbr.rel (%p211) target = $region40
        $region39: #{tpu_custom_call.1} parent=35 // pred_region
          %215 = dma.done %s207, 1024
        $region40: #{tpu_custom_call.1} parent=35 // pred_fallthru
          _
        %s216 = sand.u32 %s43, 1
        %s217 = scalar_lea.sflag [#allocation3], %s216
        %s218 = sand.u32 %s43, 1
        %s219 = smul.addr %s218, 64
        %s220 = scalar_lea.vmem [#allocation2], %s219
        %p221 = pneg %p56
        %p222 = pneg %p53
        %p223 = pneg %p77
        %p224 = pneg %p74
        %p225 = pneg %p98
        %p226 = pneg %p95
        %p227 = pneg %p119
        %p228 = pneg %p116
        %p229 = pneg %p147
        %p230 = pneg %p144
        %s231 = sand.u32 %s134, 1
        %s232 = scalar_lea.sflag [#allocation4], %s231
        %s233 = sand.u32 %s134, 1
        %s234 = smul.addr %s233, 64
        %s235 = scalar_lea.vmem [#allocation5], %s234
        %s236 = smul.u32 2, %s26
        %s237 = smul.u32 2, %s26
        %v238 = vld [vmem:[%s210] sm:$0xff]
        %v239 = vld [vmem:[%s210 + $0x8] sm:$0xff]
        %v240 = vld [vmem:[%s210 + $0x10] sm:$0xff]
        %v241 = vld [vmem:[%s210 + $0x18] sm:$0xff]
        %v242 = vld [vmem:[%s210 + $0x20] sm:$0xff]
        %v243 = vld [vmem:[%s210 + $0x28] sm:$0xff]
        %v244 = vld [vmem:[%s210 + $0x30] sm:$0xff]
        %v245 = vld [vmem:[%s210 + $0x38] sm:$0xff]
        %v246 = vadd.f32 %v238, %v240
        %v247 = vadd.f32 %v246, %v242
        %v248 = vadd.f32 %v247, %v244
        %v249 = vrot.slane %v248, 4
        %v250 = vadd.f32 %v248, %v249
        %v251 = vrot.slane %v250, 2
        %v252 = vadd.f32 %v250, %v251
        %v253 = vrot.slane %v252, 1
        %v254 = vadd.f32 %v252, %v253
        %v255 = vadd.f32 %v239, %v241
        %v256 = vadd.f32 %v255, %v243
        %v257 = vadd.f32 %v256, %v245
        %v258 = vrot.slane %v257, 4
        %v259 = vadd.f32 %v257, %v258
        %v260 = vrot.slane %v259, 2
        %v261 = vadd.f32 %v259, %v260
        %v262 = vrot.slane %v261, 1
        %v263 = vadd.f32 %v261, %v262
        %v264 = vrcp.pop 32.0
        %v265 = vmul.f32 32.0, %v264
        %v266 = vsub.f32 1.0, %v265
        %v267 = vmul.f32 %v264, %v266
        %v268 = vadd.f32 %v264, %v267
        %vm269 = vweird.f32 %v264
        %v270 = vsel %vm269, %v264, %v268
        %v271 = vmul.f32 %v254, %v270
        %v272 = vmul.f32 %v263, %v270
        %v273 = vsub.f32 %v238, %v271
        %v274 = vsub.f32 %v239, %v272
        %v275 = vsub.f32 %v240, %v271
        %v276 = vsub.f32 %v241, %v272
        %v277 = vsub.f32 %v242, %v271
        %v278 = vsub.f32 %v243, %v272
        %v279 = vsub.f32 %v244, %v271
        %v280 = vsub.f32 %v245, %v272
        %v281 = vmul.f32 %v273, %v273
        %v282 = vmul.f32 %v274, %v274
        %v283 = vmul.f32 %v275, %v275
        %v284 = vmul.f32 %v276, %v276
        %v285 = vmul.f32 %v277, %v277
        %v286 = vmul.f32 %v278, %v278
        %v287 = vmul.f32 %v279, %v279
        %v288 = vmul.f32 %v280, %v280
        %v289 = vadd.f32 %v281, %v283
        %v290 = vadd.f32 %v289, %v285
        %v291 = vadd.f32 %v290, %v287
        %v292 = vrot.slane %v291, 4
        %v293 = vadd.f32 %v291, %v292
        %v294 = vrot.slane %v293, 2
        %v295 = vadd.f32 %v293, %v294
        %v296 = vrot.slane %v295, 1
        %v297 = vadd.f32 %v295, %v296
        %v298 = vadd.f32 %v282, %v284
        %v299 = vadd.f32 %v298, %v286
        %v300 = vadd.f32 %v299, %v288
        %v301 = vrot.slane %v300, 4
        %v302 = vadd.f32 %v300, %v301
        %v303 = vrot.slane %v302, 2
        %v304 = vadd.f32 %v302, %v303
        %v305 = vrot.slane %v304, 1
        %v306 = vadd.f32 %v304, %v305
        %v307 = vmul.f32 %v297, %v270
        %v308 = vmul.f32 %v306, %v270
        %v309 = vadd.f32 %v307, 1e-05
        %v310 = vadd.f32 %v308, 1e-05
        %v311 = vrsqrt.pop %v309
        %v312 = vmul.f32 %v311, %v309
        %v313 = vmul.f32 %v312, %v311
        %v314 = vmul.f32 0.5, %v313
        %v315 = vsub.f32 1.5, %v314
        %v316 = vmul.f32 %v311, %v315
        %vm317 = vweird.f32 %v309
        %vm318 = vweird.f32 %v311
        %vm319 = vmor %vm317, %vm318
        %v320 = vsel %vm319, %v311, %v316
        %v321 = vrsqrt.pop %v310
        %v322 = vmul.f32 %v321, %v310
        %v323 = vmul.f32 %v322, %v321
        %v324 = vmul.f32 0.5, %v323
        %v325 = vsub.f32 1.5, %v324
        %v326 = vmul.f32 %v321, %v325
        %vm327 = vweird.f32 %v310
        %vm328 = vweird.f32 %v321
        %vm329 = vmor %vm327, %vm328
        %v330 = vsel %vm329, %v321, %v326
        %v331 = vmul.f32 %v273, %v320
        %v332 = vmul.f32 %v274, %v330
        %v333 = vmul.f32 %v275, %v320
        %v334 = vmul.f32 %v276, %v330
        %v335 = vmul.f32 %v277, %v320
        %v336 = vmul.f32 %v278, %v330
        %v337 = vmul.f32 %v279, %v320
        %v338 = vmul.f32 %v280, %v330
        %v339 = vld [vmem:[%s1] sm:$0xff]
        %v340 = vld [vmem:[%s1 + $0x8] sm:$0xff]
        %v341 = vld [vmem:[%s1 + $0x10] sm:$0xff]
        %v342 = vld [vmem:[%s1 + $0x18] sm:$0xff]
        %344 = vset.pattern.permute.xlu0 0
        %345 = vperm.xlu0 %344, %v339
        %v346 = vpop.permute.xlu0 %345
        %349 = vset.pattern.permute.xlu0 0
        %350 = vperm.xlu0 %349, %v340
        %v351 = vpop.permute.xlu0 %350
        %354 = vset.pattern.permute.xlu0 0
        %355 = vperm.xlu0 %354, %v341
        %v356 = vpop.permute.xlu0 %355
        %359 = vset.pattern.permute.xlu0 0
        %360 = vperm.xlu0 %359, %v342
        %v361 = vpop.permute.xlu0 %360
        %v363 = vmul.f32 %v331, %v346
        %v364 = vmul.f32 %v332, %v346
        %v365 = vmul.f32 %v333, %v351
        %v366 = vmul.f32 %v334, %v351
        %v367 = vmul.f32 %v335, %v356
        %v368 = vmul.f32 %v336, %v356
        %v369 = vmul.f32 %v337, %v361
        %v370 = vmul.f32 %v338, %v361
        %v371 = vld [vmem:[%s2] sm:$0xff]
        %v372 = vld [vmem:[%s2 + $0x8] sm:$0xff]
        %v373 = vld [vmem:[%s2 + $0x10] sm:$0xff]
        %v374 = vld [vmem:[%s2 + $0x18] sm:$0xff]
        %v375 = vld [vmem:[%s3] sm:$0xff]
        %v376 = vld [vmem:[%s3 + $0x8] sm:$0xff]
        %v377 = vld [vmem:[%s3 + $0x10] sm:$0xff]
        %v378 = vld [vmem:[%s3 + $0x18] sm:$0xff]
        %380 = vset.pattern.permute.xlu0 0
        %381 = vperm.xlu0 %380, %v375
        %v382 = vpop.permute.xlu0 %381
        %385 = vset.pattern.permute.xlu0 0
        %386 = vperm.xlu0 %385, %v376
        %v387 = vpop.permute.xlu0 %386
        %390 = vset.pattern.permute.xlu0 0
        %391 = vperm.xlu0 %390, %v377
        %v392 = vpop.permute.xlu0 %391
        %395 = vset.pattern.permute.xlu0 0
        %396 = vperm.xlu0 %395, %v378
        %v397 = vpop.permute.xlu0 %396
        %vm399 = vcmask 261120
        %v401 = vsel %vm399, %v371, 0
        %v404 = vsel %vm399, %v372, 0
        %v407 = vsel %vm399, %v373, 0
        %v410 = vsel %vm399, %v374, 0
        %412 = vmatpush.msra.mxu0 0.0
        %413 = vmatpush.msra.mxu0 0.0
        %414 = vmatpush.msra.mxu0 0.0
        %415 = vmatpush.msra.mxu0 0.0
        %416 = vmatpush.msra.mxu0 0.0
        %417 = vmatpush.msra.mxu0 0.0
        %418 = vmatpush.msra.mxu0 0.0
        %419 = vmatpush.msra.mxu0 0.0
        %420 = vmatpush.msra.mxu0 0.0
        %421 = vmatpush.msra.mxu0 0.0
        %422 = vmatpush.msra.mxu0 0.0
        %423 = vmatpush.msra.mxu0 0.0
        %424 = vmatpush.msra.mxu0 %v369
        %425 = vmatpush.msra.mxu0 %v367
        %426 = vmatpush.msra.mxu0 %v365
        %427 = vmatpush.msra.mxu0 %v363
        %428 = vmatmul.f32.gmra.mxu0 %v401
        %v429 = vpop.f32.mrf.mxu0
        %v430 = vadd.f32 %v382, %v429
        %431 = vmatmul.f32.gmra.mxu0 %v404
        %v432 = vpop.f32.mrf.mxu0
        %v433 = vadd.f32 %v387, %v432
        %434 = vmatmul.f32.gmra.mxu0 %v407
        %v435 = vpop.f32.mrf.mxu0
        %v436 = vadd.f32 %v392, %v435
        %437 = vmatmul.f32.gmra.mxu0 %v410
        %v438 = vpop.f32.mrf.mxu0
        %v439 = vadd.f32 %v397, %v438
        %440 = vdwg.mxu0
        %441 = vmatpush.msra.mxu0 0.0
        %442 = vmatpush.msra.mxu0 0.0
        %443 = vmatpush.msra.mxu0 0.0
        %444 = vmatpush.msra.mxu0 0.0
        %445 = vmatpush.msra.mxu0 0.0
        %446 = vmatpush.msra.mxu0 0.0
        %447 = vmatpush.msra.mxu0 0.0
        %448 = vmatpush.msra.mxu0 0.0
        %449 = vmatpush.msra.mxu0 0.0
        %450 = vmatpush.msra.mxu0 0.0
        %451 = vmatpush.msra.mxu0 0.0
        %452 = vmatpush.msra.mxu0 0.0
        %453 = vmatpush.msra.mxu0 %v370
        %454 = vmatpush.msra.mxu0 %v368
        %455 = vmatpush.msra.mxu0 %v366
        %456 = vmatpush.msra.mxu0 %v364
        %457 = vmatmul.f32.gmra.mxu0 %v401
        %v458 = vpop.f32.mrf.mxu0
        %v459 = vadd.f32 %v382, %v458
        %460 = vmatmul.f32.gmra.mxu0 %v404
        %v461 = vpop.f32.mrf.mxu0
        %v462 = vadd.f32 %v387, %v461
        %463 = vmatmul.f32.gmra.mxu0 %v407
        %v464 = vpop.f32.mrf.mxu0
        %v465 = vadd.f32 %v392, %v464
        %466 = vmatmul.f32.gmra.mxu0 %v410
        %v467 = vpop.f32.mrf.mxu0
        %v468 = vadd.f32 %v397, %v467
        %469 = vdwg.mxu0
        %470 = vst [vmem:[%s235] sm:$0xff] %v430
        %471 = vst [vmem:[%s235 + $0x8] sm:$0xff] %v459
        %472 = vst [vmem:[%s235 + $0x10] sm:$0xff] %v433
        %473 = vst [vmem:[%s235 + $0x18] sm:$0xff] %v462
        %474 = vst [vmem:[%s235 + $0x20] sm:$0xff] %v436
        %475 = vst [vmem:[%s235 + $0x28] sm:$0xff] %v465
        %476 = vst [vmem:[%s235 + $0x30] sm:$0xff] %v439
        %477 = vst [vmem:[%s235 + $0x38] sm:$0xff] %v468
        %s478 = sand.u32 %s134, 1
        %s479 = scalar_lea.sflag [#allocation4], %s478
        %s480 = sand.u32 %s134, 1
        %s481 = smul.addr %s480, 64
        %s482 = scalar_lea.vmem [#allocation5], %s481
        // Predicated region
        $region41: #{tpu_custom_call.1} parent=35 // pred_check
          %p483 = pneg %p144
        $region42: #{tpu_custom_call.1} parent=35 // pred_check_branch
          %485 = sbr.rel (%p483) target = $region44
        $region43: #{tpu_custom_call.1} parent=35 // pred_region
          %s486 = smul.u32 2, %s26
          %488 = vsyncadd %s479, 0
          %s489 = smul.addr %s25, 8
          %s490 = sadd.s32 %s486, %s489
          %s491 = smul.addr %s490, 8
          %s492 = scalar_lea.hbm %s4, %s491
          %s493 = sshll.u32 %s482, 4
          %s494 = int_to_ptr.vmem [resolvable:$true] %s493
          %s495 = sshll.u32 %s492, 4
          %s496 = int_to_ptr.hbm [resolvable:$true] %s495
          %501 = dma.vmem_to_hbm [thread:$0]  %s494, 1024, %s496, %s479, 256, 256, 16
        $region44: #{tpu_custom_call.1} parent=35 // pred_fallthru
          _
      $region36: #{tpu_custom_call.1} parent=5 // pred_fallthru
        _
      %p502 = scmp.le.s32.totalorder 2, %s16
      // Predicated region
      $region45: #{tpu_custom_call.1} parent=5 // pred_check
        %p503 = pneg %p502
      $region46: #{tpu_custom_call.1} parent=5 // pred_check_branch
        %505 = sbr.rel (%p503) target = $region48
      $region47: #{tpu_custom_call.1} parent=5 // pred_region
        %s506 = ssub.s32 %s16, 2
        // Predicated region
        $region49: #{tpu_custom_call.1} parent=47 // pred_check
          %p507 = pneg %p150
        $region50: #{tpu_custom_call.1} parent=47 // pred_check_branch
          %509 = sbr.rel (%p507) target = $region52
        $region51: #{tpu_custom_call.1} parent=47 // pred_region
          %s510 = sand.u32 %s135, 1
          %s511 = scalar_lea.sflag [#allocation4], %s510
          %s512 = sand.u32 %s135, 1
          %s513 = smul.addr %s512, 64
          %s514 = scalar_lea.vmem [#allocation5], %s513
          %516 = dma.done %s511, 1024
        $region52: #{tpu_custom_call.1} parent=47 // pred_fallthru
          _
      $region48: #{tpu_custom_call.1} parent=5 // pred_fallthru
        _
    $region6: #{tpu_custom_call.1} parent=1 // loop_footer
      %s20 = sadd.s32 1, %s16
    $region7: #{tpu_custom_call.1} parent=1 // loop_footer_branch
      %15 = sbr.rel target = $region3
    $region8: #{tpu_custom_call.1} parent=1 // loop_exit
      _
    %517 = vsyncpa [#allocation3], 1
    %s518 = scalar_lea.sflag [#allocation3], 1
    %519 = vsyncpa %s518, 1
    %520 = vsyncpa [#allocation4], 1
    %s521 = scalar_lea.sflag [#allocation4], 1
    %522 = vsyncpa %s521, 1

</llo_original>
